<compile_context>
chip_gen: v7x
topology: tpu7x:2x2x1
jax: 0.10.0
libtpu: 0.0.40
codegen_flags: <defaults>
</compile_context>

<pallas_src>
import math

import jax
import jax.numpy as jnp
import numpy as np
from jax import lax
from jax.experimental import pallas as pl
from jax.experimental.pallas import tpu as pltpu

_PI = np.float32(math.pi)
_HALF_PI = np.float32(math.pi / 2.0)
_QUARTER_PI = np.float32(math.pi / 4.0)
_INV_PI = np.float32(1.0 / math.pi)

_TARGET_BLOCK_BYTES = 4 * 1024 * 1024  # ~4 MiB per block (f32-equivalent)


def _trapezoid_f32(x_f32):
    """(pi/4)*(tri(x)+tri(x+pi/2)) via the one-triangle clamp identity.

    tri has period 2*pi and amplitude pi/2, hence
        tri(x) + tri(x + pi/2) == clamp(2*tri(x + pi/4), -pi/2, pi/2)
        => out == (pi/2) * clamp(tri(x + pi/4), -pi/4, pi/4)
    """
    xs = x_f32 + _QUARTER_PI
    k = jnp.floor(xs * _INV_PI + np.float32(0.5))  # round(xs / pi)
    t = xs - _PI * k                               # in [-pi/2, pi/2)
    # Negate t where k is odd: move k's LSB into the f32 sign bit and XOR
    # (correct for negative k under two's complement).
    sbit = jnp.left_shift(k.astype(jnp.int32), 31)
    ti = lax.bitcast_convert_type(t, jnp.int32)
    tri = lax.bitcast_convert_type(jnp.bitwise_xor(ti, sbit), jnp.float32)
    return _HALF_PI * jnp.clip(tri, -_QUARTER_PI, _QUARTER_PI)


def _periodic_relu_kernel(x_ref, o_ref):
    x = x_ref[...].astype(jnp.float32)
    o_ref[...] = _trapezoid_f32(x).astype(o_ref.dtype)


def _periodic_relu_jnp(x):
    # Plain-jnp path for <128-element tails / tiny inputs (identical formula).
    return _trapezoid_f32(x.astype(jnp.float32)).astype(x.dtype)


def _periodic_relu_impl(x: jax.Array) -> jax.Array:
    orig_shape = x.shape
    flat = x.reshape(-1)
    n = flat.shape[0]
    if n == 0:
        return x

    # Widest lane-dense last dim in {1024,512,256,128}; exact divisor preferred so
    # the whole tensor streams through the kernel with no extra HBM round-trips.
    lanes = next((l for l in (1024, 512, 256, 128) if n % l == 0), 128)
    n_main = (n // lanes) * lanes

    if n_main == 0:
        # Fewer than 128 elements: a kernel launch is pure overhead.
        return _periodic_relu_jnp(flat).reshape(orig_shape)

    x2d = (flat if n_main == n else flat[:n_main]).reshape(-1, lanes)
    rows = x2d.shape[0]

    itemsize = jnp.dtype(x2d.dtype).itemsize
    sub = max(8, 32 // itemsize)        # sublane multiple: 8 / 16 / 32 for 32/16/8-bit
    eff = max(itemsize, 4)              # size blocks for their f32 intermediates
    block_rows = _TARGET_BLOCK_BYTES // (lanes * eff)
    block_rows = max(sub, (block_rows // sub) * sub)

    if rows <= sub:
        block_rows = rows               # full-extent block: legal for any row count
    elif block_rows >= rows:
        # Whole tensor fits in one block: split into >=2 grid steps so both of
        # v7x's TensorCores get work (neutral on single-TC v5e/v6e).
        block_rows = ((pl.cdiv(rows, 2) + sub - 1) // sub) * sub

    grid = (pl.cdiv(rows, block_rows),)  # ragged last block handled by Pallas masking

    out2d = pl.pallas_call(
        _periodic_relu_kernel,
        out_shape=jax.ShapeDtypeStruct(x2d.shape, x2d.dtype),
        grid_spec=pl.GridSpec(
            grid=grid,
            in_specs=[pl.BlockSpec((block_rows, lanes), lambda i: (i, 0))],
            out_specs=pl.BlockSpec((block_rows, lanes), lambda i: (i, 0)),
        ),
        compiler_params=pltpu.CompilerParams(
            dimension_semantics=("parallel",),   # shards grid steps across v7x's 2 TCs
            vmem_limit_bytes=32 * 1024 * 1024,
        ),
    )(x2d)

    out = out2d.reshape(-1)
    if n_main != n:
        # <128-element ragged tail in plain jnp (avoids pad + full-output slice passes).
        tail = _periodic_relu_jnp(flat[n_main:])
        out = jnp.concatenate([out, tail])
    return out.reshape(orig_shape)


periodic_relu = jax.jit(_periodic_relu_impl)


def _reference(x: jax.Array) -> jax.Array:
    # Direct two-triangle transcription of the PyTorch module.
    xf = x.astype(jnp.float32)

    def tri(v):
        k = jnp.floor(v / _PI + 0.5)
        return (v - _PI * k) * (1.0 - 2.0 * jnp.mod(k, 2.0))

    return (_QUARTER_PI * (tri(xf) + tri(xf + _HALF_PI))).astype(x.dtype)


if __name__ == "__main__":
    key = jax.random.PRNGKey(0)

    # NCHW-style input, small shape (2048 elements -> 1024-lane kernel path).
    x = jax.random.normal(key, (2, 4, 16, 16), dtype=jnp.float32) * 4.0
    y = periodic_relu(x)
    jax.block_until_ready(y)
    np.testing.assert_allclose(np.asarray(y), np.asarray(_reference(x)), rtol=1e-5, atol=1e-5)
    assert y.shape == x.shape and y.dtype == x.dtype

    # Ragged element count (3*5*7*11 = 1155): aligned-prefix kernel + jnp tail path.
    x2 = jax.random.normal(jax.random.PRNGKey(1), (3, 5, 7, 11), dtype=jnp.float32) * 6.0
    y2 = periodic_relu(x2)
    jax.block_until_ready(y2)
    np.testing.assert_allclose(np.asarray(y2), np.asarray(_reference(x2)), rtol=1e-5, atol=1e-5)
    assert y2.shape == x2.shape and y2.dtype == x2.dtype

    # Dense sweep over several periods (incl. negative x): validates the
    # one-triangle clamp identity against the two-triangle reference.
    xs = jnp.linspace(-8.0 * math.pi, 8.0 * math.pi, 8 * 1024, dtype=jnp.float32).reshape(8, 1024)
    y3 = periodic_relu(xs)
    jax.block_until_ready(y3)
    np.testing.assert_allclose(np.asarray(y3), np.asarray(_reference(xs)), rtol=1e-5, atol=1e-5)

    # bf16 input exercises the 16-row sublane rounding and f32 internal math.
    xb = (jax.random.normal(jax.random.PRNGKey(2), (4, 8, 32)) * 5.0).astype(jnp.bfloat16)
    yb = periodic_relu(xb)
    jax.block_until_ready(yb)
    np.testing.assert_allclose(np.asarray(yb, dtype=np.float32),
                               np.asarray(_reference(xb), dtype=np.float32),
                               rtol=2e-2, atol=2e-2)
    assert yb.dtype == xb.dtype

    print("KERNEL_OK")
</pallas_src>

<mosaic_0001>
module attributes {stable_mosaic.version = 11 : i64} {
  func.func @_periodic_relu_kernel(%arg0: i32, %arg1: memref<2x1024xf32, #tpu.memory_space<vmem>>, %arg2: memref<2x1024xf32, #tpu.memory_space<vmem>>) attributes {dimension_semantics = [#tpu.dimension_semantics<parallel>], iteration_bounds = array<i64: 1>, scalar_prefetch = 0 : i64, scratch_operands = 0 : i64, tpu.core_type = #tpu.core_type<tc>, window_params = [{transform_indices = @transform_0, window_bounds = array<i64: 2, 1024>}, {transform_indices = @transform_1, window_bounds = array<i64: 2, 1024>}]} {
    %c0 = arith.constant 0 : index
    %c0_0 = arith.constant 0 : index
    %0 = vector.load %arg1[%c0, %c0_0] : memref<2x1024xf32, #tpu.memory_space<vmem>>, vector<2x1024xf32>
    %cst = arith.constant 0.785398185 : f32
    %1 = vector.broadcast %cst : f32 to vector<2x1024xf32>
    %2 = arith.addf %0, %1 : vector<2x1024xf32>
    %cst_1 = arith.constant 0.318309873 : f32
    %3 = vector.broadcast %cst_1 : f32 to vector<2x1024xf32>
    %4 = arith.mulf %2, %3 : vector<2x1024xf32>
    %cst_2 = arith.constant 5.000000e-01 : f32
    %5 = vector.broadcast %cst_2 : f32 to vector<2x1024xf32>
    %6 = arith.addf %4, %5 : vector<2x1024xf32>
    %7 = math.floor %6 : vector<2x1024xf32>
    %cst_3 = arith.constant 3.14159274 : f32
    %8 = vector.broadcast %cst_3 : f32 to vector<2x1024xf32>
    %9 = arith.mulf %8, %7 : vector<2x1024xf32>
    %10 = arith.subf %2, %9 : vector<2x1024xf32>
    %11 = arith.fptosi %7 : vector<2x1024xf32> to vector<2x1024xi32>
    %c31_i32 = arith.constant 31 : i32
    %12 = vector.broadcast %c31_i32 : i32 to vector<2x1024xi32>
    %13 = arith.shli %11, %12 : vector<2x1024xi32>
    %14 = tpu.bitcast %10 : vector<2x1024xf32> -> vector<2x1024xi32>
    %15 = arith.xori %14, %13 : vector<2x1024xi32>
    %16 = tpu.bitcast %15 : vector<2x1024xi32> -> vector<2x1024xf32>
    %cst_4 = arith.constant -0.785398185 : f32
    %cst_5 = arith.constant 0.785398185 : f32
    %17 = vector.broadcast %cst_4 : f32 to vector<2x1024xf32>
    %18 = arith.maximumf %17, %16 : vector<2x1024xf32>
    %19 = vector.broadcast %cst_5 : f32 to vector<2x1024xf32>
    %20 = arith.minimumf %19, %18 : vector<2x1024xf32>
    %cst_6 = arith.constant 1.57079637 : f32
    %21 = vector.broadcast %cst_6 : f32 to vector<2x1024xf32>
    %22 = arith.mulf %21, %20 : vector<2x1024xf32>
    %c0_7 = arith.constant 0 : index
    %c0_8 = arith.constant 0 : index
    %23 = vector.load %arg2[%c0_7, %c0_8] : memref<2x1024xf32, #tpu.memory_space<vmem>>, vector<2x1024xf32>
    tpu.vector_store %arg2[%c0_7, %c0_8], %22 {strides = array<i32>} : memref<2x1024xf32, #tpu.memory_space<vmem>>, vector<2x1024xf32>,
    return
  }
  func.func @transform_0(%arg0: i32) -> (i32, i32) {
    %c0_i32 = arith.constant 0 : i32
    %c0_i32_0 = arith.constant 0 : i32
    return %arg0, %c0_i32 : i32, i32
  }
  func.func @transform_1(%arg0: i32) -> (i32, i32) {
    %c0_i32 = arith.constant 0 : i32
    %c0_i32_0 = arith.constant 0 : i32
    return %arg0, %c0_i32 : i32, i32
  }
}

</mosaic_0001>

<llo_original>
// kernel: _periodic_relu_impl.1
$region0: #{_periodic_relu_impl.1}
  #allocation0 [shape = 'u32[]', space=smem, size = 0x4, offset = 0x4, fixed_abs, tag = 'smem constant byte address 0x4 - core index']
  #allocation1 [shape = 'u32[144,128]{1,0:T(1,128)}', space=vmem, size = 0x12000, scoped, tag = 'internal scratch']
  %s0 = inlined_call_operand.vmem [shape: f32[2,1024], index: 0, kind: input, shape index: {}]
  %s1 = inlined_call_operand.vmem [shape: f32[2,1024], index: 1, kind: output, shape index: {}]
  %s2 = sld [smem:[#allocation0]]
  $region14: #{_periodic_relu_impl.1} parent=0
    _
  %s4 = ssub.s32 1, %s2
  %s5 = scalar_select 0, %s4, %s2
  // Predicated region
  $region2: #{_periodic_relu_impl.1} parent=0 // pred_check
    _
  $region3: #{_periodic_relu_impl.1} parent=0 // pred_check_branch
    %7 = sbr.rel (0) target = $region5
  $region4: #{_periodic_relu_impl.1} parent=0 // pred_region
    _
  $region5: #{_periodic_relu_impl.1} parent=0 // pred_fallthru
    _
  %v8 = vld [vmem:[%s0] sm:$0xff]
  %v9 = vld [vmem:[%s0 + $0x8] sm:$0xff]
  %v10 = vadd.f32 %v8, 0.7853982
  %v11 = vadd.f32 %v9, 0.7853982
  %v12 = vmul.f32 %v10, 0.31830987
  %v13 = vmul.f32 %v11, 0.31830987
  %v14 = vadd.f32 %v12, 0.5
  %v15 = vadd.f32 %v13, 0.5
  %v16 = vfloor.f32 %v14
  %v17 = vfloor.f32 %v15
  %v18 = vmul.f32 %v16, 3.1415927
  %v19 = vmul.f32 %v17, 3.1415927
  %v20 = vsub.f32 %v10, %v18
  %v21 = vsub.f32 %v11, %v19
  %v22 = vcvt.f32.s32.to.zero.pseudo %v16
  %v23 = vcvt.f32.s32.to.zero.pseudo %v17
  %v24 = vshll.u32 %v22, 31
  %v25 = vshll.u32 %v23, 31
  %v28 = vcombine.high %v20, %v20
  %v30 = vunpack.c.l.s4 1983009808
  %v31 = vunpack.c.0.s8 %v30
  %v32 = vlaneseq
  %v33 = vshrl.u32 %v32, 7
  %v34 = vsub.s32 %v31, %v33
  %v35 = vrot.slane %v20, %v34
  %v37 = vunpack.c.l.s4 1983009808
  %v38 = vunpack.c.0.s8 %v37
  %v39 = vlaneseq
  %v40 = vshrl.u32 %v39, 7
  %v41 = vsub.s32 %v38, %v40
  %v42 = vrot.slane %v28, %v41
  %v43 = vcombine.high %v35, %v35
  %v44 = vcombine.high %v42, %v42
  %v45 = vcombine.high %v21, %v21
  %v47 = vunpack.c.l.s4 1983009808
  %v48 = vunpack.c.0.s8 %v47
  %v49 = vlaneseq
  %v50 = vshrl.u32 %v49, 7
  %v51 = vsub.s32 %v48, %v50
  %v52 = vrot.slane %v21, %v51
  %v54 = vunpack.c.l.s4 1983009808
  %v55 = vunpack.c.0.s8 %v54
  %v56 = vlaneseq
  %v57 = vshrl.u32 %v56, 7
  %v58 = vsub.s32 %v55, %v57
  %v59 = vrot.slane %v45, %v58
  %v60 = vcombine.high %v52, %v52
  %v61 = vcombine.high %v59, %v59
  %v62 = vcombine.high %v24, %v24
  %v64 = vunpack.c.l.s4 1983009808
  %v65 = vunpack.c.0.s8 %v64
  %v66 = vlaneseq
  %v67 = vshrl.u32 %v66, 7
  %v68 = vsub.s32 %v65, %v67
  %v69 = vrot.slane %v24, %v68
  %v71 = vunpack.c.l.s4 1983009808
  %v72 = vunpack.c.0.s8 %v71
  %v73 = vlaneseq
  %v74 = vshrl.u32 %v73, 7
  %v75 = vsub.s32 %v72, %v74
  %v76 = vrot.slane %v62, %v75
  %v77 = vcombine.high %v69, %v69
  %v78 = vcombine.high %v76, %v76
  %v79 = vcombine.high %v25, %v25
  %v81 = vunpack.c.l.s4 1983009808
  %v82 = vunpack.c.0.s8 %v81
  %v83 = vlaneseq
  %v84 = vshrl.u32 %v83, 7
  %v85 = vsub.s32 %v82, %v84
  %v86 = vrot.slane %v25, %v85
  %v88 = vunpack.c.l.s4 1983009808
  %v89 = vunpack.c.0.s8 %v88
  %v90 = vlaneseq
  %v91 = vshrl.u32 %v90, 7
  %v92 = vsub.s32 %v89, %v91
  %v93 = vrot.slane %v79, %v92
  %v94 = vcombine.high %v86, %v86
  %v95 = vcombine.high %v93, %v93
  %v96 = vxor.u32 %v35, %v69
  %v97 = vxor.u32 %v43, %v77
  %v98 = vxor.u32 %v42, %v76
  %v99 = vxor.u32 %v44, %v78
  %v100 = vxor.u32 %v52, %v86
  %v101 = vxor.u32 %v60, %v94
  %v102 = vxor.u32 %v59, %v93
  %v103 = vxor.u32 %v61, %v95
  %v112 = vmax.f32 %v96, -0.7853982
  %v113 = vmax.f32 %v97, -0.7853982
  %v114 = vmax.f32 %v98, -0.7853982
  %v115 = vmax.f32 %v99, -0.7853982
  %v116 = vmax.f32 %v100, -0.7853982
  %v117 = vmax.f32 %v101, -0.7853982
  %v118 = vmax.f32 %v102, -0.7853982
  %v119 = vmax.f32 %v103, -0.7853982
  %v120 = vmin.f32 %v112, 0.7853982
  %v121 = vmin.f32 %v113, 0.7853982
  %v122 = vmin.f32 %v114, 0.7853982
  %v123 = vmin.f32 %v115, 0.7853982
  %v124 = vmin.f32 %v116, 0.7853982
  %v125 = vmin.f32 %v117, 0.7853982
  %v126 = vmin.f32 %v118, 0.7853982
  %v127 = vmin.f32 %v119, 0.7853982
  %v128 = vmul.f32 %v120, 1.5707964
  %v129 = vmul.f32 %v121, 1.5707964
  %v130 = vmul.f32 %v122, 1.5707964
  %v131 = vmul.f32 %v123, 1.5707964
  %v132 = vmul.f32 %v124, 1.5707964
  %v133 = vmul.f32 %v125, 1.5707964
  %v134 = vmul.f32 %v126, 1.5707964
  %v135 = vmul.f32 %v127, 1.5707964
  %v144 = vcombine.low %v128, %v129
  %v145 = vcombine.low %v130, %v131
  %v147 = vunpack.c.l.s4 1983009808
  %v148 = vunpack.c.0.s8 %v147
  %v149 = vlaneseq
  %v150 = vshrl.u32 %v149, 7
  %v151 = vsub.s32 %v148, %v150
  %v152 = vrot.slane %v144, %v151
  %v154 = vunpack.c.l.s4 1983009808
  %v155 = vunpack.c.0.s8 %v154
  %v156 = vlaneseq
  %v157 = vshrl.u32 %v156, 7
  %v158 = vsub.s32 %v155, %v157
  %v159 = vrot.slane %v145, %v158
  %v160 = vcombine.low %v152, %v159
  %v161 = vcombine.low %v132, %v133
  %v162 = vcombine.low %v134, %v135
  %v164 = vunpack.c.l.s4 1983009808
  %v165 = vunpack.c.0.s8 %v164
  %v166 = vlaneseq
  %v167 = vshrl.u32 %v166, 7
  %v168 = vsub.s32 %v165, %v167
  %v169 = vrot.slane %v161, %v168
  %v171 = vunpack.c.l.s4 1983009808
  %v172 = vunpack.c.0.s8 %v171
  %v173 = vlaneseq
  %v174 = vshrl.u32 %v173, 7
  %v175 = vsub.s32 %v172, %v174
  %v176 = vrot.slane %v162, %v175
  %v177 = vcombine.low %v169, %v176
  %180 = vst [vmem:[%s1] sm:$0xff] %v160
  %181 = vst [vmem:[%s1 + $0x8] sm:$0xff] %v177
  // Predicated region
  $region6: #{_periodic_relu_impl.1} parent=0 // pred_check
    _
  $region7: #{_periodic_relu_impl.1} parent=0 // pred_check_branch
    %183 = sbr.rel (0) target = $region9
  $region8: #{_periodic_relu_impl.1} parent=0 // pred_region
    _
  $region9: #{_periodic_relu_impl.1} parent=0 // pred_fallthru
    _
  // Predicated region
  $region10: #{_periodic_relu_impl.1} parent=0 // pred_check
    _
  $region11: #{_periodic_relu_impl.1} parent=0 // pred_check_branch
    %185 = sbr.rel (0) target = $region13
  $region12: #{_periodic_relu_impl.1} parent=0 // pred_region
    _
  $region13: #{_periodic_relu_impl.1} parent=0 // pred_fallthru
    _

</llo_original>
